<compile_context>
chip_gen: v5e
topology: v5e:2x2
jax: 0.10.0
libtpu: 0.0.40
codegen_flags: <defaults>
</compile_context>

<pallas_src>
import functools

import jax
import jax.numpy as jnp
from jax import lax
from jax.experimental import pallas as pl
from jax.experimental.pallas import tpu as pltpu


def _round_up(a, b):
    return (a + b - 1) // b * b


def _l2norm_kernel_rowwise(x_ref, o_ref, *, native_scale):
    """Plain per-row L2 normalization (feature dim spans the whole lane axis)."""
    x = x_ref[...]
    xf = x.astype(jnp.float32)
    ssum = jnp.sum(xf * xf, axis=-1, keepdims=True)
    inv = lax.rsqrt(ssum)                 # EUP; no eps -> zero row gives NaN (matches torch)
    if native_scale:                      # bf16 store path: scale in native dtype
        o_ref[...] = (x * inv.astype(x.dtype)).astype(o_ref.dtype)
    else:
        o_ref[...] = (xf * inv).astype(o_ref.dtype)


def _l2norm_kernel_packed(x_ref, blk_ref, o_ref, *, native_scale):
    """Each 128-lane physical row packs several logical rows.

    blk_ref holds a block-diagonal 0/1 matrix (bf16, VMEM-resident via a
    constant index_map), so a matmul both sums the squares within each group
    and broadcasts the sum back across that group's lanes.
    """
    x = x_ref[...]
    xf = x.astype(jnp.float32)
    sq = xf * xf
    blk = blk_ref[...]                    # (Dp, Dp) bf16, exact 0/1

    # Dekker-style 3-term bf16 split of the f32 squares: three native bf16 MXU
    # passes + f32 accumulation reproduce an f32-accurate grouped sum without
    # a Precision.HIGHEST f32 matmul (important on v5e's 197 TF/s MXU).
    hi = sq.astype(jnp.bfloat16)
    r1 = sq - hi.astype(jnp.float32)
    mid = r1.astype(jnp.bfloat16)
    lo = (r1 - mid.astype(jnp.float32)).astype(jnp.bfloat16)
    ssum = jnp.dot(hi, blk, preferred_element_type=jnp.float32)
    ssum = ssum + jnp.dot(mid, blk, preferred_element_type=jnp.float32)
    ssum = ssum + jnp.dot(lo, blk, preferred_element_type=jnp.float32)

    inv = lax.rsqrt(ssum)                 # lane j holds rsqrt of its group's sum
    if native_scale:
        o_ref[...] = (x * inv.astype(x.dtype)).astype(o_ref.dtype)
    else:
        o_ref[...] = (xf * inv).astype(o_ref.dtype)


def normalization_layer(x, *, tile_rows=None, vmem_budget_bytes=None):
    """L2-normalize x along the last axis with a Pallas TPU kernel."""
    orig_shape = x.shape
    D = orig_shape[-1]
    x2 = x.reshape(-1, D)
    B = x2.shape[0]
    dtype = x2.dtype
    itemsize = jnp.dtype(dtype).itemsize
    sublane = {4: 8, 2: 16, 1: 32}.get(itemsize, 8)

    # ---- feature-axis layout: lane-dense packing / zero padding -------------
    if D >= 128:
        Dpad = _round_up(D, 128)          # lane-dense stores for wide features
        r = 1
    else:
        Dpad = pl.next_power_of_2(D)      # divisors of 128 are powers of two
        r = 128 // Dpad                   # logical rows per 128-lane physical row
    Dp = r * Dpad                         # physical lane width (multiple of 128)

    Bp = _round_up(B, r)
    pad_rows, pad_feat = Bp - B, Dpad - D
    xw = x2
    if pad_rows or pad_feat:
        # Single zero-pad: zero features add nothing to the sum of squares,
        # padded rows only affect lanes that are sliced away afterwards.
        xw = jnp.pad(xw, ((0, pad_rows), (0, pad_feat)))
    rows = Bp // r
    xw = xw.reshape(rows, Dp)
    row_bytes = Dp * itemsize

    # ---- VMEM limit & per-buffer tile budget (per-chip aware) ---------------
    try:
        vmem_cap = pltpu.get_tpu_info().vmem_capacity_bytes
    except Exception:
        vmem_cap = 64 * 1024 * 1024
    # 48 MiB on v7x (64 MiB physical), 96 MiB on v5e/v6e (128 MiB physical).
    vmem_limit = int(min(vmem_cap * 3 // 4, 96 * 1024 * 1024))
    if vmem_budget_bytes is None:
        # 2 arrays x 2 double-buffers + in-kernel f32/bf16 temporaries.
        vmem_budget_bytes = vmem_limit // (8 if r > 1 else 6)

    total_bytes = rows * row_bytes
    if tile_rows is None:
        if total_bytes <= (1 << 20) or rows <= sublane:
            tile_rows = rows              # tiny input: single step, full block
        else:
            budget_rows = max(sublane,
                              (vmem_budget_bytes // row_bytes) // sublane * sublane)
            # Force >= ~4 grid steps: DMA/compute pipelining + both v7x cores.
            quarter = max(sublane, _round_up(pl.cdiv(rows, 4), sublane))
            tile_rows = min(budget_rows, quarter)
    else:
        tile_rows = max(1, min(tile_rows, rows))
        if tile_rows < rows:
            tile_rows = max(sublane, (tile_rows // sublane) * sublane)
    grid = (pl.cdiv(rows, tile_rows),)    # ragged last block handled by Pallas

    # ---- advisory cost estimate (mem-bound custom call) ----------------------
    mxu_flops = 6 * rows * Dp * Dp if r > 1 else 0
    cost = pl.CostEstimate(
        flops=int(5 * rows * Dp + mxu_flops),
        transcendentals=int(rows * r),
        bytes_accessed=int(2 * rows * Dp * itemsize + (Dp * Dp * 2 if r > 1 else 0)),
    )
    cparams = pltpu.CompilerParams(
        dimension_semantics=("parallel",),        # megacore-shardable row axis
        vmem_limit_bytes=vmem_limit,
    )

    native_scale = jnp.dtype(dtype) == jnp.dtype(jnp.bfloat16)
    x_spec = pl.BlockSpec((tile_rows, Dp), lambda i: (i, 0))
    out_spec = pl.BlockSpec((tile_rows, Dp), lambda i: (i, 0))
    out_shape = jax.ShapeDtypeStruct((rows, Dp), dtype)

    if r > 1:
        # Block-diagonal 0/1 matrix, built once in the wrapper (hoisted out of
        # the kernel) and kept VMEM-resident via a constant index_map.
        lane = jnp.arange(Dp, dtype=jnp.int32)
        blkdiag = (lane[:, None] // Dpad == lane[None, :] // Dpad).astype(jnp.bfloat16)
        out = pl.pallas_call(
            functools.partial(_l2norm_kernel_packed, native_scale=native_scale),
            out_shape=out_shape,
            grid_spec=pltpu.PrefetchScalarGridSpec(
                num_scalar_prefetch=0, grid=grid,
                in_specs=[x_spec,
                          pl.BlockSpec((Dp, Dp), lambda i: (0, 0))],
                out_specs=out_spec),
            compiler_params=cparams,
            cost_estimate=cost,
        )(xw, blkdiag)
    else:
        out = pl.pallas_call(
            functools.partial(_l2norm_kernel_rowwise, native_scale=native_scale),
            out_shape=out_shape,
            grid_spec=pltpu.PrefetchScalarGridSpec(
                num_scalar_prefetch=0, grid=grid,
                in_specs=[x_spec], out_specs=out_spec),
            compiler_params=cparams,
            cost_estimate=cost,
        )(xw)

    # Undo lane packing / padding.
    out = out.reshape(Bp, Dpad)
    if pad_rows or pad_feat:
        out = out[:B, :D]
    return out.reshape(orig_shape)


if __name__ == "__main__":
    key = jax.random.PRNGKey(0)
    k1, k2, k3, k4 = jax.random.split(key, 4)

    def _ref(v):
        vf = v.astype(jnp.float32)
        return vf / jnp.linalg.norm(vf, axis=-1, keepdims=True)

    # (1) narrow D: exercises the lane-packing (grouped MXU reduction) path.
    x1 = jax.random.normal(k1, (8, 32), dtype=jnp.float32)
    o1 = jax.block_until_ready(normalization_layer(x1))
    assert o1.shape == x1.shape and o1.dtype == x1.dtype
    assert jnp.allclose(o1, _ref(x1), atol=1e-5, rtol=1e-5)

    # (2) D >= 128 with an explicit multi-step grid (row-wise reduction path).
    x2 = jax.random.normal(k2, (256, 512), dtype=jnp.float32)
    o2 = jax.block_until_ready(normalization_layer(x2, tile_rows=64))
    assert jnp.allclose(o2, _ref(x2), atol=1e-5, rtol=1e-5)

    # (3) leading batch dims + D that doesn't divide 128 (zero-pad + pack).
    x3 = jax.random.normal(k3, (4, 6, 40), dtype=jnp.float32)
    o3 = jax.block_until_ready(normalization_layer(x3))
    assert o3.shape == x3.shape
    assert jnp.allclose(o3, _ref(x3), atol=1e-5, rtol=1e-5)

    # (4) bf16 input: scale multiply stays in bf16 on the store path.
    x4 = jax.random.normal(k4, (16, 256), dtype=jnp.bfloat16)
    o4 = jax.block_until_ready(normalization_layer(x4))
    assert o4.dtype == jnp.bfloat16 and o4.shape == x4.shape
    assert jnp.allclose(o4.astype(jnp.float32), _ref(x4), atol=2e-2, rtol=2e-2)

    print("KERNEL_OK")
</pallas_src>

<mosaic_0001>
module attributes {stable_mosaic.version = 11 : i64} {
  func.func @_l2norm_kernel_packed(%arg0: i32, %arg1: memref<2x128xf32, #tpu.memory_space<vmem>>, %arg2: memref<128x128xbf16, #tpu.memory_space<vmem>>, %arg3: memref<2x128xf32, #tpu.memory_space<vmem>>) attributes {dimension_semantics = [#tpu.dimension_semantics<parallel>], iteration_bounds = array<i64: 1>, scalar_prefetch = 0 : i64, scratch_operands = 0 : i64, tpu.core_type = #tpu.core_type<tc>, window_params = [{transform_indices = @transform_0, window_bounds = array<i64: 2, 128>}, {pipeline_mode = #tpu.pipeline_mode<synchronous>, transform_indices = @transform_1, window_bounds = array<i64: 128, 128>}, {transform_indices = @transform_2, window_bounds = array<i64: 2, 128>}]} {
    %c0 = arith.constant 0 : index
    %c0_0 = arith.constant 0 : index
    %0 = vector.load %arg1[%c0, %c0_0] : memref<2x128xf32, #tpu.memory_space<vmem>>, vector<2x128xf32>
    %1 = arith.mulf %0, %0 : vector<2x128xf32>
    %c0_1 = arith.constant 0 : index
    %c0_2 = arith.constant 0 : index
    %2 = vector.load %arg2[%c0_1, %c0_2] : memref<128x128xbf16, #tpu.memory_space<vmem>>, vector<128x128xbf16>
    %3 = arith.truncf %1 : vector<2x128xf32> to vector<2x128xbf16>
    %4 = arith.extf %3 : vector<2x128xbf16> to vector<2x128xf32>
    %5 = arith.subf %1, %4 : vector<2x128xf32>
    %6 = arith.truncf %5 : vector<2x128xf32> to vector<2x128xbf16>
    %7 = arith.extf %6 : vector<2x128xbf16> to vector<2x128xf32>
    %8 = arith.subf %5, %7 : vector<2x128xf32>
    %9 = arith.truncf %8 : vector<2x128xf32> to vector<2x128xbf16>
    %cst = arith.constant dense<0.000000e+00> : vector<2x128xf32>
    %10 = tpu.matmul %3, %2, %cst {dimension_numbers = #tpu.dot_dimension_numbers<[1], [0], [0], [1], [0, 0, 1, 1], [], []>} : vector<2x128xbf16>, vector<128x128xbf16>, vector<2x128xf32> -> vector<2x128xf32>
    %cst_3 = arith.constant dense<0.000000e+00> : vector<2x128xf32>
    %11 = tpu.matmul %6, %2, %cst_3 {dimension_numbers = #tpu.dot_dimension_numbers<[1], [0], [0], [1], [0, 0, 1, 1], [], []>} : vector<2x128xbf16>, vector<128x128xbf16>, vector<2x128xf32> -> vector<2x128xf32>
    %12 = arith.addf %10, %11 : vector<2x128xf32>
    %cst_4 = arith.constant dense<0.000000e+00> : vector<2x128xf32>
    %13 = tpu.matmul %9, %2, %cst_4 {dimension_numbers = #tpu.dot_dimension_numbers<[1], [0], [0], [1], [0, 0, 1, 1], [], []>} : vector<2x128xbf16>, vector<128x128xbf16>, vector<2x128xf32> -> vector<2x128xf32>
    %14 = arith.addf %12, %13 : vector<2x128xf32>
    %15 = math.rsqrt %14 : vector<2x128xf32>
    %16 = arith.mulf %0, %15 : vector<2x128xf32>
    %c0_5 = arith.constant 0 : index
    %c0_6 = arith.constant 0 : index
    %17 = vector.load %arg3[%c0_5, %c0_6] : memref<2x128xf32, #tpu.memory_space<vmem>>, vector<2x128xf32>
    tpu.vector_store %arg3[%c0_5, %c0_6], %16 {strides = array<i32>} : memref<2x128xf32, #tpu.memory_space<vmem>>, vector<2x128xf32>,
    return
  }
  func.func @transform_0(%arg0: i32) -> (i32, i32) {
    %c0_i32 = arith.constant 0 : i32
    %c0_i32_0 = arith.constant 0 : i32
    return %arg0, %c0_i32 : i32, i32
  }
  func.func @transform_1(%arg0: i32) -> (i32, i32) {
    %c0_i32 = arith.constant 0 : i32
    %c0_i32_0 = arith.constant 0 : i32
    %c0_i32_1 = arith.constant 0 : i32
    return %c0_i32, %c0_i32_0 : i32, i32
  }
  func.func @transform_2(%arg0: i32) -> (i32, i32) {
    %c0_i32 = arith.constant 0 : i32
    %c0_i32_0 = arith.constant 0 : i32
    return %arg0, %c0_i32 : i32, i32
  }
}

</mosaic_0001>

<llo_original>
// kernel: tpu_custom_call.1
$region0: #{tpu_custom_call.1}
  #allocation0 [shape = 'u32[]', space=smem, size = 0x4, offset = 0x4, fixed_abs, tag = 'smem constant byte address 0x4 - core index']
  #allocation1 [shape = 'u32[72,128]{1,0:T(1,128)}', space=vmem, size = 0x9000, scoped, tag = 'internal scratch']
  %s0 = inlined_call_operand.hbm [shape: f32[2,128], index: 0, kind: input, shape index: {}]
  %s1 = inlined_call_operand.hbm [shape: bf16[128,128], index: 1, kind: input, shape index: {}]
  %s2 = inlined_call_operand.hbm [shape: f32[2,128], index: 2, kind: output, shape index: {}]
  %s3 = sld [smem:[#allocation0]]
  $region26: #{tpu_custom_call.1} parent=0
    _
  %s5 = ssub.s32 1, %s3
  %s6 = scalar_select 0, %s5, %s3
  $region1: #{tpu_custom_call.1} parent=0
    #allocation2 [shape = 'u8[1024]{0}', space=vmem, size = 0x400, scoped, tag = 'input window, operand 0, single buffered']
    #allocation3 [shape = 's32[1]{0}', space=sflag, size = 0x4, scoped, tag = 'scoped memory for tpu_custom_call.1']
    #allocation4 [shape = 's32[1]{0}', space=sflag, size = 0x4, scoped, tag = 'scoped memory for tpu_custom_call.1']
    #allocation5 [shape = 'u8[32768]{0}', space=vmem, size = 0x8000, scoped, tag = 'input window, operand 1, single buffered']
    #allocation6 [shape = 's32[1]{0}', space=sflag, size = 0x4, scoped, tag = 'scoped memory for tpu_custom_call.1']
    #allocation7 [shape = 'u8[1024]{0}', space=vmem, size = 0x400, scoped, tag = 'output window, operand 0, single buffered']
    %7 = vsyncpa [#allocation3], 0
    %8 = vsyncpa [#allocation6], 0
    %9 = vsyncpa [#allocation4], 0
    // Predicated region
    $region2: #{tpu_custom_call.1} parent=1 // pred_check
      _
    $region3: #{tpu_custom_call.1} parent=1 // pred_check_branch
      %11 = sbr.rel (0) target = $region5
    $region4: #{tpu_custom_call.1} parent=1 // pred_region
      %13 = vsyncadd [#allocation3], 0
      %s15 = sshll.u32 %s0, 4
      %s16 = int_to_ptr.hbm [resolvable:$true] %s15
      %s17 = sshll.u32 [#allocation2], 4
      %s18 = int_to_ptr.vmem [resolvable:$true] %s17
      %20 = dma.hbm_to_vmem [thread:$0]  %s16, 32, %s18, [#allocation3]
    $region5: #{tpu_custom_call.1} parent=1 // pred_fallthru
      _
    // Predicated region
    $region6: #{tpu_custom_call.1} parent=1 // pred_check
      _
    $region7: #{tpu_custom_call.1} parent=1 // pred_check_branch
      %22 = sbr.rel (0) target = $region9
    $region8: #{tpu_custom_call.1} parent=1 // pred_region
      %24 = vsyncadd [#allocation6], 0
      %s25 = sshll.u32 %s1, 4
      %s26 = int_to_ptr.hbm [resolvable:$true] %s25
      %s27 = sshll.u32 [#allocation5], 4
      %s28 = int_to_ptr.vmem [resolvable:$true] %s27
      %33 = dma.hbm_to_vmem [thread:$0]  %s26, 1024, %s28, [#allocation6], 64, 64, 4
    $region9: #{tpu_custom_call.1} parent=1 // pred_fallthru
      _
    // Predicated region
    $region10: #{tpu_custom_call.1} parent=1 // pred_check
      _
    $region11: #{tpu_custom_call.1} parent=1 // pred_check_branch
      %35 = sbr.rel (0) target = $region13
    $region12: #{tpu_custom_call.1} parent=1 // pred_region
      %37 = dma.done [#allocation3], 32
    $region13: #{tpu_custom_call.1} parent=1 // pred_fallthru
      _
    // Predicated region
    $region14: #{tpu_custom_call.1} parent=1 // pred_check
      _
    $region15: #{tpu_custom_call.1} parent=1 // pred_check_branch
      %39 = sbr.rel (0) target = $region17
    $region16: #{tpu_custom_call.1} parent=1 // pred_region
      %41 = dma.done [#allocation6], 1024
    $region17: #{tpu_custom_call.1} parent=1 // pred_fallthru
      _
    %v42 = vld [vmem:[#allocation2] sm:$0x3]
    %v43 = vmul.f32 %v42, %v42
    %v44 = vld [vmem:[#allocation5] sm:$0xf]
    %v45 = vld [vmem:[#allocation5 + $0x4] sm:$0xf]
    %v46 = vld [vmem:[#allocation5 + $0x8] sm:$0xf]
    %v47 = vld [vmem:[#allocation5 + $0xc] sm:$0xf]
    %v48 = vld [vmem:[#allocation5 + $0x10] sm:$0xf]
    %v49 = vld [vmem:[#allocation5 + $0x14] sm:$0xf]
    %v50 = vld [vmem:[#allocation5 + $0x18] sm:$0xf]
    %v51 = vld [vmem:[#allocation5 + $0x1c] sm:$0xf]
    %v52 = vld [vmem:[#allocation5 + $0x20] sm:$0xf]
    %v53 = vld [vmem:[#allocation5 + $0x24] sm:$0xf]
    %v54 = vld [vmem:[#allocation5 + $0x28] sm:$0xf]
    %v55 = vld [vmem:[#allocation5 + $0x2c] sm:$0xf]
    %v56 = vld [vmem:[#allocation5 + $0x30] sm:$0xf]
    %v57 = vld [vmem:[#allocation5 + $0x34] sm:$0xf]
    %v58 = vld [vmem:[#allocation5 + $0x38] sm:$0xf]
    %v59 = vld [vmem:[#allocation5 + $0x3c] sm:$0xf]
    %v60 = vpack.c.bf16 %v43, %v43
    %v61 = vunpack.c.l.bf16 %v60
    %v62 = vsub.f32 %v43, %v61
    %v63 = vpack.c.bf16 %v62, %v62
    %v64 = vunpack.c.l.bf16 %v63
    %v65 = vsub.f32 %v62, %v64
    %v66 = vpack.c.bf16 %v65, %v65
    %v83 = vunpack.c.l.b16 %v44
    %v84 = vunpack.c.l.b16 %v45
    %v85 = vunpack.c.l.b16 %v46
    %v86 = vunpack.c.l.b16 %v47
    %v87 = vunpack.c.l.b16 %v48
    %v88 = vunpack.c.l.b16 %v49
    %v89 = vunpack.c.l.b16 %v50
    %v90 = vunpack.c.l.b16 %v51
    %v91 = vunpack.c.l.b16 %v52
    %v92 = vunpack.c.l.b16 %v53
    %v93 = vunpack.c.l.b16 %v54
    %v94 = vunpack.c.l.b16 %v55
    %v95 = vunpack.c.l.b16 %v56
    %v96 = vunpack.c.l.b16 %v57
    %v97 = vunpack.c.l.b16 %v58
    %v98 = vunpack.c.l.b16 %v59
    %v99 = vpack.c.b16 %v84, %v83
    %v100 = vpack.c.b16 %v86, %v85
    %v101 = vpack.c.b16 %v88, %v87
    %v102 = vpack.c.b16 %v90, %v89
    %v103 = vpack.c.b16 %v92, %v91
    %v104 = vpack.c.b16 %v94, %v93
    %v105 = vpack.c.b16 %v96, %v95
    %v106 = vpack.c.b16 %v98, %v97
    %115 = vmatpush.bf16.msra.mxu0 %v106
    %116 = vmatpush.bf16.msra.mxu0 %v105
    %117 = vmatpush.bf16.msra.mxu0 %v104
    %118 = vmatpush.bf16.msra.mxu0 %v103
    %119 = vmatpush.bf16.msra.mxu0 %v102
    %120 = vmatpush.bf16.msra.mxu0 %v101
    %121 = vmatpush.bf16.msra.mxu0 %v100
    %122 = vmatpush.bf16.msra.mxu0 %v99
    %123 = vmatmul.bf16.gmra.mxu0 %v63
    %v124 = vpop.f32.mrf.mxu0
    %v125 = vadd.f32 0.0, %v124
    %v126 = vpop.f32.mrf.mxu0
    %127 = vdwg.mxu0
    %128 = vmatpush.bf16.msra.mxu0 %v106
    %129 = vmatpush.bf16.msra.mxu0 %v105
    %130 = vmatpush.bf16.msra.mxu0 %v104
    %131 = vmatpush.bf16.msra.mxu0 %v103
    %132 = vmatpush.bf16.msra.mxu0 %v102
    %133 = vmatpush.bf16.msra.mxu0 %v101
    %134 = vmatpush.bf16.msra.mxu0 %v100
    %135 = vmatpush.bf16.msra.mxu0 %v99
    %136 = vmatmul.bf16.gmra.mxu0 %v60
    %v137 = vpop.f32.mrf.mxu0
    %v138 = vadd.f32 %v125, %v137
    %v139 = vpop.f32.mrf.mxu0
    %140 = vdwg.mxu0
    %141 = vmatpush.bf16.msra.mxu0 %v106
    %142 = vmatpush.bf16.msra.mxu0 %v105
    %143 = vmatpush.bf16.msra.mxu0 %v104
    %144 = vmatpush.bf16.msra.mxu0 %v103
    %145 = vmatpush.bf16.msra.mxu0 %v102
    %146 = vmatpush.bf16.msra.mxu0 %v101
    %147 = vmatpush.bf16.msra.mxu0 %v100
    %148 = vmatpush.bf16.msra.mxu0 %v99
    %149 = vmatmul.bf16.gmra.mxu0 %v66
    %v150 = vpop.f32.mrf.mxu0
    %v151 = vadd.f32 0.0, %v150
    %v152 = vpop.f32.mrf.mxu0
    %153 = vdwg.mxu0
    %v154 = vadd.f32 %v138, %v151
    %v155 = vrsqrt.pop %v154
    %v156 = vmul.f32 %v155, %v154
    %v157 = vmul.f32 %v156, %v155
    %v158 = vmul.f32 0.5, %v157
    %v159 = vsub.f32 1.5, %v158
    %v160 = vmul.f32 %v155, %v159
    %vm161 = vweird.f32 %v154
    %vm162 = vweird.f32 %v155
    %vm163 = vmor %vm161, %vm162
    %v164 = vsel %vm163, %v155, %v160
    %v165 = vmul.f32 %v42, %v164
    %166 = vst [vmem:[#allocation7] sm:$0x3] %v165
    // Predicated region
    $region18: #{tpu_custom_call.1} parent=1 // pred_check
      _
    $region19: #{tpu_custom_call.1} parent=1 // pred_check_branch
      %168 = sbr.rel (0) target = $region21
    $region20: #{tpu_custom_call.1} parent=1 // pred_region
      %170 = vsyncadd [#allocation4], 0
      %s172 = sshll.u32 [#allocation7], 4
      %s173 = int_to_ptr.vmem [resolvable:$true] %s172
      %s174 = sshll.u32 %s2, 4
      %s175 = int_to_ptr.hbm [resolvable:$true] %s174
      %177 = dma.vmem_to_hbm [thread:$0]  %s173, 32, %s175, [#allocation4]
    $region21: #{tpu_custom_call.1} parent=1 // pred_fallthru
      _
    // Predicated region
    $region22: #{tpu_custom_call.1} parent=1 // pred_check
      _
    $region23: #{tpu_custom_call.1} parent=1 // pred_check_branch
      %179 = sbr.rel (0) target = $region25
    $region24: #{tpu_custom_call.1} parent=1 // pred_region
      %181 = dma.done [#allocation4], 32
    $region25: #{tpu_custom_call.1} parent=1 // pred_fallthru
      _
    %182 = vsyncpa [#allocation3], 1
    %183 = vsyncpa [#allocation6], 1
    %184 = vsyncpa [#allocation4], 1

</llo_original>
